<compile_context>
chip_gen: v7x
topology: tpu7x:2x2x1
jax: 0.10.0
libtpu: 0.0.40
codegen_flags: <defaults>
</compile_context>

<pallas_src>
import math
from functools import partial

import numpy as np
import jax
import jax.numpy as jnp
from jax import lax
from jax.experimental import pallas as pl
from jax.experimental.pallas import tpu as pltpu


# ----------------------------------------------------------------------------
# Host-side glue: crop-parameter sampling (ContrastiveCrop.__get_params)
# ----------------------------------------------------------------------------
def get_crop_params(height, width, region, scale, ratio, rng):
    """Replicates ContrastiveCrop.__get_params (alpha=1 -> Beta(1,1))."""
    area = height * width
    log_ratio = (math.log(ratio[0]), math.log(ratio[1]))
    for _ in range(10):
        target_area = area * rng.uniform(scale[0], scale[1])
        aspect_ratio = math.exp(rng.uniform(log_ratio[0], log_ratio[1]))
        w = int(round(math.sqrt(target_area * aspect_ratio)))
        h = int(round(math.sqrt(target_area / aspect_ratio)))
        if 0 < w <= width and 0 < h <= height:
            h0, w0, h1, w1 = region
            ch0 = min(max(int(height * h0) - h // 2, 0), height - h)
            ch1 = min(max(int(height * h1) - h // 2, 0), height - h)
            cw0 = min(max(int(width * w0) - w // 2, 0), width - w)
            cw1 = min(max(int(width * w1) - w // 2, 0), width - w)
            i = ch0 + int((ch1 - ch0) * rng.beta(1.0, 1.0))
            j = cw0 + int((cw1 - cw0) * rng.beta(1.0, 1.0))
            return i, j, h, w
    # Fallback: central crop
    in_ratio = float(width) / float(height)
    if in_ratio < min(ratio):
        w = width
        h = int(round(w / min(ratio)))
    elif in_ratio > max(ratio):
        h = height
        w = int(round(h * max(ratio)))
    else:
        w = width
        h = height
    return (height - h) // 2, (width - w) // 2, h, w


def bilinear_weight_matrix(full_size, crop_start, crop_size, out_size):
    """Host reference only: (out_size, full_size) bilinear resize weights
    (align_corners=False) with the crop offset folded in."""
    W = np.zeros((out_size, full_size), dtype=np.float64)
    scale = crop_size / out_size
    for o in range(out_size):
        s = (o + 0.5) * scale - 0.5
        s = min(max(s, 0.0), float(crop_size - 1))
        lo = int(math.floor(s))
        hi = min(lo + 1, crop_size - 1)
        frac = s - lo
        W[o, crop_start + lo] += 1.0 - frac
        W[o, crop_start + hi] += frac
    return W


# ----------------------------------------------------------------------------
# Pallas kernel
# ----------------------------------------------------------------------------
def _bilinear_weights(start, length, shape, out_axis, col_axis, out_size):
    """On-device dense crop+resize weight matrix (antialias=False bilinear).

    Entry at (output index o, full-image column col) is the contribution of
    full-image pixel `col` to output pixel `o`, for a crop window starting at
    `start` with extent `length`.  All math f32/int32 (v5e-safe VPU path).
    """
    o = lax.broadcasted_iota(jnp.int32, shape, out_axis).astype(jnp.float32)
    col = lax.broadcasted_iota(jnp.int32, shape, col_axis)
    length_f = length.astype(jnp.float32)
    # Same operation order as the f64 host/torchvision formula:
    #   s = (o + 0.5) * (crop / out) - 0.5
    s = (o + 0.5) * (length_f / float(out_size)) - 0.5
    s = jnp.clip(s, 0.0, length_f - 1.0)
    lo = jnp.floor(s)
    frac = s - lo
    lo_i = lo.astype(jnp.int32)
    hi_i = jnp.minimum(lo_i + 1, length - 1)
    w = jnp.where(col == start + lo_i, 1.0 - frac, 0.0)
    w = w + jnp.where(col == start + hi_i, frac, 0.0)
    return w


def _resized_crop_kernel(params_ref, img_ref, out_ref, *, channels):
    # params_ref: SMEM (4, B) int32 rows = (i, j, h, w) per image
    # img_ref:    VMEM (C*H, W)       (batch dim squeezed away by BlockSpec)
    # out_ref:    VMEM (C*out_h, out_w) sublane-packed per channel
    C = channels
    CH, W = img_ref.shape
    H = CH // C
    c_out_h, out_w = out_ref.shape
    out_h = c_out_h // C

    b = pl.program_id(0)
    i = params_ref[0, b]
    j = params_ref[1, b]
    h = params_ref[2, b]
    w = params_ref[3, b]

    # On-device weight construction (no host numpy loops / per-call H2D copies).
    wh = _bilinear_weights(i, h, (out_h, H), 0, 1, out_h)      # (out_h, H)
    wwt = _bilinear_weights(j, w, (W, out_w), 1, 0, out_w)     # (W, out_w)

    wh_bf = wh.astype(jnp.bfloat16)
    wwt_bf = wwt.astype(jnp.bfloat16)
    # No-op when the caller already supplies bf16 images (recommended).
    img_bf = img_ref[...].astype(jnp.bfloat16)                 # (C*H, W)

    # Stage 1: width contraction for all channels in a single MXU matmul.
    tmp = jnp.dot(img_bf, wwt_bf,
                  preferred_element_type=jnp.float32)          # (C*H, out_w)
    # NOTE: re-quantizing the f32 accumulator to bf16 between stages adds a
    # second rounding step; acceptable for augmentation-grade numerics.
    tmp_bf = tmp.astype(jnp.bfloat16)

    # Stage 2: height contraction per channel, stored straight into the
    # sublane-packed output slab (no concatenate, no lane shuffles).
    for c in range(C):
        res = jnp.dot(wh_bf, tmp_bf[c * H:(c + 1) * H, :],
                      preferred_element_type=jnp.float32)      # (out_h, out_w)
        out_ref[c * out_h:(c + 1) * out_h, :] = res.astype(out_ref.dtype)


@partial(jax.jit, static_argnames=("out_h", "out_w"))
def contrastive_crop_resize(imgs, crop_params_t, *, out_h, out_w):
    """Batched crop + bilinear resize.

    imgs:          (B, C, H, W), floating dtype (preserved in the output).
    crop_params_t: (4, B) int32, rows = (i, j, h, w).
    returns:       (B, C, out_h, out_w)
    """
    B, C, H, W = imgs.shape
    if not jnp.issubdtype(imgs.dtype, jnp.floating):
        raise TypeError("contrastive_crop_resize expects a floating dtype.")
    itemsize = jnp.dtype(imgs.dtype).itemsize
    imgs2d = imgs.reshape(B, C * H, W)   # channels folded into sublanes

    # Advisory cost estimate: lets XLA overlap the kernel with the params
    # H2D copy and the surrounding (free) reshape.
    flops = 2 * B * C * H * W * out_w + 2 * B * C * out_h * H * out_w
    bytes_accessed = (B * C * H * W * itemsize
                      + B * C * out_h * out_w * itemsize
                      + 4 * B * 4)
    cost = pl.CostEstimate(flops=flops, transcendentals=0,
                           bytes_accessed=bytes_accessed)

    # Per-grid-step VMEM footprint (input x2 buffers + bf16 copy + stage-1
    # temporaries + weights + output x2).  Explicit budget matters on v7x
    # (64 MiB physical / 32 MiB scoped default per TC).
    in_block = C * H * W * itemsize
    out_block = C * out_h * out_w * itemsize
    temps = (C * H * W * 2                      # img bf16 copy
             + C * H * out_w * (4 + 2)          # tmp f32 + tmp bf16
             + (out_h * H + W * out_w) * (4 + 2)  # weights f32 + bf16
             + C * out_h * out_w * 4)           # stage-2 f32 results
    vmem_limit = int(min(max(32 * 1024 * 1024,
                             2 * (in_block + out_block) + 2 * temps),
                         96 * 1024 * 1024))

    slab = pl.pallas_call(
        partial(_resized_crop_kernel, channels=C),
        out_shape=jax.ShapeDtypeStruct((B, C * out_h, out_w), imgs.dtype),
        grid_spec=pltpu.PrefetchScalarGridSpec(
            num_scalar_prefetch=1,
            grid=(B,),
            in_specs=[
                pl.BlockSpec((None, C * H, W), lambda b, params: (b, 0, 0)),
            ],
            out_specs=pl.BlockSpec((None, C * out_h, out_w),
                                   lambda b, params: (b, 0, 0)),
        ),
        compiler_params=pltpu.CompilerParams(
            dimension_semantics=("parallel",),
            vmem_limit_bytes=vmem_limit),
        cost_estimate=cost,
    )(crop_params_t, imgs2d)

    # Contiguous reshape only -- no transpose, no extra HBM pass.
    return slab.reshape(B, C, out_h, out_w)


def contrastive_crop_forward(imgs, *, size=(8, 8), scale=(0.08, 1.0),
                             ratio=(3.0 / 4.0, 4.0 / 3.0), seed=0):
    """Batched ContrastiveCrop.forward (data_index=None -> region [0,0,1,1])."""
    B, C, H, W = imgs.shape
    region = (0.0, 0.0, 1.0, 1.0)
    rng = np.random.default_rng(seed)
    # TODO(synk): crop-parameter sampling uses host numpy RNG instead of
    # torch's generator; the algorithm is identical but draws differ bitwise.
    params = np.asarray(
        [get_crop_params(H, W, region, scale, ratio, rng) for _ in range(B)],
        dtype=np.int32)                                   # (B, 4)
    params_t = jnp.asarray(np.ascontiguousarray(params.T))  # (4, B) -> tiny SMEM
    out = contrastive_crop_resize(imgs, params_t,
                                  out_h=size[0], out_w=size[1])
    return out, params


if __name__ == "__main__":
    key = jax.random.PRNGKey(0)
    B, C, H, W = 2, 4, 16, 16
    size = (8, 8)
    imgs = jax.random.uniform(key, (B, C, H, W), dtype=jnp.float32)

    out, params = contrastive_crop_forward(imgs, size=size, seed=0)
    out = jax.block_until_ready(out)
    assert out.shape == (B, C, size[0], size[1]), out.shape
    assert out.dtype == imgs.dtype, out.dtype

    # Host reference: same crop + bilinear-resize operator in float64 numpy.
    imgs_np = np.asarray(imgs, dtype=np.float64)
    ref = np.empty((B, C, size[0], size[1]), dtype=np.float64)
    for b in range(B):
        i, j, h, w = (int(v) for v in params[b])
        wh = bilinear_weight_matrix(H, i, h, size[0])   # (out_h, H)
        ww = bilinear_weight_matrix(W, j, w, size[1])   # (out_w, W)
        ref[b] = np.einsum("oh,chw,pw->cop", wh, imgs_np[b], ww)

    # bf16 MXU operands (double-rounded between stages) -> loose tolerance
    # vs. the f64 reference.
    np.testing.assert_allclose(np.asarray(out, dtype=np.float64), ref,
                               rtol=2e-2, atol=2e-2)
    print("KERNEL_OK")
</pallas_src>

<mosaic_0001>
module attributes {stable_mosaic.version = 11 : i64} {
  func.func @_resized_crop_kernel(%arg0: i32, %arg1: memref<4x2xi32, #tpu.memory_space<smem>>, %arg2: memref<1x64x16xf32, #tpu.memory_space<vmem>>, %arg3: memref<1x32x8xf32, #tpu.memory_space<vmem>>) attributes {dimension_semantics = [#tpu.dimension_semantics<parallel>], iteration_bounds = array<i64: 2>, scalar_prefetch = 1 : i64, scratch_operands = 0 : i64, tpu.core_type = #tpu.core_type<tc>, window_params = [{transform_indices = @transform_0, window_bounds = array<i64: 1, 64, 16>}, {transform_indices = @transform_1, window_bounds = array<i64: 1, 32, 8>}]} {
    %c0 = arith.constant 0 : index
    %0 = arith.index_cast %arg0 : i32 to index
    %1 = memref.load %arg1[%c0, %0] : memref<4x2xi32, #tpu.memory_space<smem>>
    %c1 = arith.constant 1 : index
    %2 = arith.index_cast %arg0 : i32 to index
    %3 = memref.load %arg1[%c1, %2] : memref<4x2xi32, #tpu.memory_space<smem>>
    %c2 = arith.constant 2 : index
    %4 = arith.index_cast %arg0 : i32 to index
    %5 = memref.load %arg1[%c2, %4] : memref<4x2xi32, #tpu.memory_space<smem>>
    %c3 = arith.constant 3 : index
    %6 = arith.index_cast %arg0 : i32 to index
    %7 = memref.load %arg1[%c3, %6] : memref<4x2xi32, #tpu.memory_space<smem>>
    %8 = tpu.iota {dimensions = array<i32: 0>} : vector<8x16xi32>
    %9 = arith.sitofp %8 : vector<8x16xi32> to vector<8x16xf32>
    %10 = tpu.iota {dimensions = array<i32: 1>} : vector<8x16xi32>
    %11 = arith.sitofp %5 : i32 to f32
    %cst = arith.constant 5.000000e-01 : f32
    %12 = vector.broadcast %cst : f32 to vector<8x16xf32>
    %13 = arith.addf %9, %12 : vector<8x16xf32>
    %cst_0 = arith.constant 8.000000e+00 : f32
    %14 = arith.divf %11, %cst_0 : f32
    %15 = vector.broadcast %14 : f32 to vector<8x16xf32>
    %16 = arith.mulf %13, %15 : vector<8x16xf32>
    %cst_1 = arith.constant 5.000000e-01 : f32
    %17 = vector.broadcast %cst_1 : f32 to vector<8x16xf32>
    %18 = arith.subf %16, %17 : vector<8x16xf32>
    %cst_2 = arith.constant 1.000000e+00 : f32
    %19 = arith.subf %11, %cst_2 : f32
    %cst_3 = arith.constant 0.000000e+00 : f32
    %20 = vector.broadcast %cst_3 : f32 to vector<8x16xf32>
    %21 = arith.maximumf %20, %18 : vector<8x16xf32>
    %22 = vector.broadcast %19 : f32 to vector<8x16xf32>
    %23 = arith.minimumf %22, %21 : vector<8x16xf32>
    %24 = math.floor %23 : vector<8x16xf32>
    %25 = arith.subf %23, %24 : vector<8x16xf32>
    %26 = arith.fptosi %24 : vector<8x16xf32> to vector<8x16xi32>
    %c1_i32 = arith.constant 1 : i32
    %27 = vector.broadcast %c1_i32 : i32 to vector<8x16xi32>
    %28 = arith.addi %26, %27 : vector<8x16xi32>
    %c1_i32_4 = arith.constant 1 : i32
    %29 = arith.subi %5, %c1_i32_4 : i32
    %30 = vector.broadcast %29 : i32 to vector<8x16xi32>
    %31 = arith.minsi %28, %30 : vector<8x16xi32>
    %32 = vector.broadcast %1 : i32 to vector<8x16xi32>
    %33 = arith.addi %32, %26 : vector<8x16xi32>
    %34 = arith.cmpi eq, %10, %33 : vector<8x16xi32>
    %cst_5 = arith.constant 1.000000e+00 : f32
    %35 = vector.broadcast %cst_5 : f32 to vector<8x16xf32>
    %36 = arith.subf %35, %25 : vector<8x16xf32>
    %cst_6 = arith.constant 0.000000e+00 : f32
    %37 = vector.broadcast %cst_6 : f32 to vector<8x16xf32>
    %38 = arith.select %34, %36, %37 : vector<8x16xi1>, vector<8x16xf32>
    %39 = vector.broadcast %1 : i32 to vector<8x16xi32>
    %40 = arith.addi %39, %31 : vector<8x16xi32>
    %41 = arith.cmpi eq, %10, %40 : vector<8x16xi32>
    %cst_7 = arith.constant 0.000000e+00 : f32
    %42 = vector.broadcast %cst_7 : f32 to vector<8x16xf32>
    %43 = arith.select %41, %25, %42 : vector<8x16xi1>, vector<8x16xf32>
    %44 = arith.addf %38, %43 : vector<8x16xf32>
    %45 = tpu.iota {dimensions = array<i32: 1>} : vector<16x8xi32>
    %46 = arith.sitofp %45 : vector<16x8xi32> to vector<16x8xf32>
    %47 = tpu.iota {dimensions = array<i32: 0>} : vector<16x8xi32>
    %48 = arith.sitofp %7 : i32 to f32
    %cst_8 = arith.constant 5.000000e-01 : f32
    %49 = vector.broadcast %cst_8 : f32 to vector<16x8xf32>
    %50 = arith.addf %46, %49 : vector<16x8xf32>
    %cst_9 = arith.constant 8.000000e+00 : f32
    %51 = arith.divf %48, %cst_9 : f32
    %52 = vector.broadcast %51 : f32 to vector<16x8xf32>
    %53 = arith.mulf %50, %52 : vector<16x8xf32>
    %cst_10 = arith.constant 5.000000e-01 : f32
    %54 = vector.broadcast %cst_10 : f32 to vector<16x8xf32>
    %55 = arith.subf %53, %54 : vector<16x8xf32>
    %cst_11 = arith.constant 1.000000e+00 : f32
    %56 = arith.subf %48, %cst_11 : f32
    %cst_12 = arith.constant 0.000000e+00 : f32
    %57 = vector.broadcast %cst_12 : f32 to vector<16x8xf32>
    %58 = arith.maximumf %57, %55 : vector<16x8xf32>
    %59 = vector.broadcast %56 : f32 to vector<16x8xf32>
    %60 = arith.minimumf %59, %58 : vector<16x8xf32>
    %61 = math.floor %60 : vector<16x8xf32>
    %62 = arith.subf %60, %61 : vector<16x8xf32>
    %63 = arith.fptosi %61 : vector<16x8xf32> to vector<16x8xi32>
    %c1_i32_13 = arith.constant 1 : i32
    %64 = vector.broadcast %c1_i32_13 : i32 to vector<16x8xi32>
    %65 = arith.addi %63, %64 : vector<16x8xi32>
    %c1_i32_14 = arith.constant 1 : i32
    %66 = arith.subi %7, %c1_i32_14 : i32
    %67 = vector.broadcast %66 : i32 to vector<16x8xi32>
    %68 = arith.minsi %65, %67 : vector<16x8xi32>
    %69 = vector.broadcast %3 : i32 to vector<16x8xi32>
    %70 = arith.addi %69, %63 : vector<16x8xi32>
    %71 = arith.cmpi eq, %47, %70 : vector<16x8xi32>
    %cst_15 = arith.constant 1.000000e+00 : f32
    %72 = vector.broadcast %cst_15 : f32 to vector<16x8xf32>
    %73 = arith.subf %72, %62 : vector<16x8xf32>
    %cst_16 = arith.constant 0.000000e+00 : f32
    %74 = vector.broadcast %cst_16 : f32 to vector<16x8xf32>
    %75 = arith.select %71, %73, %74 : vector<16x8xi1>, vector<16x8xf32>
    %76 = vector.broadcast %3 : i32 to vector<16x8xi32>
    %77 = arith.addi %76, %68 : vector<16x8xi32>
    %78 = arith.cmpi eq, %47, %77 : vector<16x8xi32>
    %cst_17 = arith.constant 0.000000e+00 : f32
    %79 = vector.broadcast %cst_17 : f32 to vector<16x8xf32>
    %80 = arith.select %78, %62, %79 : vector<16x8xi1>, vector<16x8xf32>
    %81 = arith.addf %75, %80 : vector<16x8xf32>
    %82 = arith.truncf %44 : vector<8x16xf32> to vector<8x16xbf16>
    %83 = arith.truncf %81 : vector<16x8xf32> to vector<16x8xbf16>
    %c0_18 = arith.constant 0 : index
    %c0_19 = arith.constant 0 : index
    %c0_20 = arith.constant 0 : index
    %84 = vector.load %arg2[%c0_18, %c0_19, %c0_20] : memref<1x64x16xf32, #tpu.memory_space<vmem>>, vector<1x64x16xf32>
    %85 = vector.shape_cast %84 : vector<1x64x16xf32> to vector<64x16xf32>
    %86 = arith.truncf %85 : vector<64x16xf32> to vector<64x16xbf16>
    %cst_21 = arith.constant dense<0.000000e+00> : vector<64x8xf32>
    %87 = tpu.matmul %86, %83, %cst_21 {dimension_numbers = #tpu.dot_dimension_numbers<[1], [0], [0], [1], [0, 0, 1, 1], [], []>} : vector<64x16xbf16>, vector<16x8xbf16>, vector<64x8xf32> -> vector<64x8xf32>
    %88 = arith.truncf %87 : vector<64x8xf32> to vector<64x8xbf16>
    %89 = vector.extract_strided_slice %88 {offsets = [0, 0], sizes = [16, 8], strides = [1, 1]} : vector<64x8xbf16> to vector<16x8xbf16>
    %cst_22 = arith.constant dense<0.000000e+00> : vector<8x8xf32>
    %90 = tpu.matmul %82, %89, %cst_22 {dimension_numbers = #tpu.dot_dimension_numbers<[1], [0], [0], [1], [0, 0, 1, 1], [], []>} : vector<8x16xbf16>, vector<16x8xbf16>, vector<8x8xf32> -> vector<8x8xf32>
    %c0_23 = arith.constant 0 : index
    %c0_24 = arith.constant 0 : index
    %c0_25 = arith.constant 0 : index
    %91 = vector.load %arg3[%c0_23, %c0_24, %c0_25] : memref<1x32x8xf32, #tpu.memory_space<vmem>>, vector<1x8x8xf32>
    %92 = vector.shape_cast %91 : vector<1x8x8xf32> to vector<8x8xf32>
    %93 = vector.shape_cast %90 : vector<8x8xf32> to vector<1x8x8xf32>
    tpu.vector_store %arg3[%c0_23, %c0_24, %c0_25], %93 {strides = array<i32>} : memref<1x32x8xf32, #tpu.memory_space<vmem>>, vector<1x8x8xf32>,
    %94 = vector.extract_strided_slice %88 {offsets = [16, 0], sizes = [16, 8], strides = [1, 1]} : vector<64x8xbf16> to vector<16x8xbf16>
    %cst_26 = arith.constant dense<0.000000e+00> : vector<8x8xf32>
    %95 = tpu.matmul %82, %94, %cst_26 {dimension_numbers = #tpu.dot_dimension_numbers<[1], [0], [0], [1], [0, 0, 1, 1], [], []>} : vector<8x16xbf16>, vector<16x8xbf16>, vector<8x8xf32> -> vector<8x8xf32>
    %c0_27 = arith.constant 0 : index
    %c8 = arith.constant 8 : index
    %c0_28 = arith.constant 0 : index
    %96 = vector.load %arg3[%c0_27, %c8, %c0_28] : memref<1x32x8xf32, #tpu.memory_space<vmem>>, vector<1x8x8xf32>
    %97 = vector.shape_cast %96 : vector<1x8x8xf32> to vector<8x8xf32>
    %98 = vector.shape_cast %95 : vector<8x8xf32> to vector<1x8x8xf32>
    tpu.vector_store %arg3[%c0_27, %c8, %c0_28], %98 {strides = array<i32>} : memref<1x32x8xf32, #tpu.memory_space<vmem>>, vector<1x8x8xf32>,
    %99 = vector.extract_strided_slice %88 {offsets = [32, 0], sizes = [16, 8], strides = [1, 1]} : vector<64x8xbf16> to vector<16x8xbf16>
    %cst_29 = arith.constant dense<0.000000e+00> : vector<8x8xf32>
    %100 = tpu.matmul %82, %99, %cst_29 {dimension_numbers = #tpu.dot_dimension_numbers<[1], [0], [0], [1], [0, 0, 1, 1], [], []>} : vector<8x16xbf16>, vector<16x8xbf16>, vector<8x8xf32> -> vector<8x8xf32>
    %c0_30 = arith.constant 0 : index
    %c16 = arith.constant 16 : index
    %c0_31 = arith.constant 0 : index
    %101 = vector.load %arg3[%c0_30, %c16, %c0_31] : memref<1x32x8xf32, #tpu.memory_space<vmem>>, vector<1x8x8xf32>
    %102 = vector.shape_cast %101 : vector<1x8x8xf32> to vector<8x8xf32>
    %103 = vector.shape_cast %100 : vector<8x8xf32> to vector<1x8x8xf32>
    tpu.vector_store %arg3[%c0_30, %c16, %c0_31], %103 {strides = array<i32>} : memref<1x32x8xf32, #tpu.memory_space<vmem>>, vector<1x8x8xf32>,
    %104 = vector.extract_strided_slice %88 {offsets = [48, 0], sizes = [16, 8], strides = [1, 1]} : vector<64x8xbf16> to vector<16x8xbf16>
    %cst_32 = arith.constant dense<0.000000e+00> : vector<8x8xf32>
    %105 = tpu.matmul %82, %104, %cst_32 {dimension_numbers = #tpu.dot_dimension_numbers<[1], [0], [0], [1], [0, 0, 1, 1], [], []>} : vector<8x16xbf16>, vector<16x8xbf16>, vector<8x8xf32> -> vector<8x8xf32>
    %c0_33 = arith.constant 0 : index
    %c24 = arith.constant 24 : index
    %c0_34 = arith.constant 0 : index
    %106 = vector.load %arg3[%c0_33, %c24, %c0_34] : memref<1x32x8xf32, #tpu.memory_space<vmem>>, vector<1x8x8xf32>
    %107 = vector.shape_cast %106 : vector<1x8x8xf32> to vector<8x8xf32>
    %108 = vector.shape_cast %105 : vector<8x8xf32> to vector<1x8x8xf32>
    tpu.vector_store %arg3[%c0_33, %c24, %c0_34], %108 {strides = array<i32>} : memref<1x32x8xf32, #tpu.memory_space<vmem>>, vector<1x8x8xf32>,
    return
  }
  func.func @transform_0(%arg0: i32, %arg1: memref<4x2xi32, #tpu.memory_space<smem>>) -> (i32, i32, i32) {
    %c0_i32 = arith.constant 0 : i32
    %c0_i32_0 = arith.constant 0 : i32
    %c0_i32_1 = arith.constant 0 : i32
    return %arg0, %c0_i32, %c0_i32_0 : i32, i32, i32
  }
  func.func @transform_1(%arg0: i32, %arg1: memref<4x2xi32, #tpu.memory_space<smem>>) -> (i32, i32, i32) {
    %c0_i32 = arith.constant 0 : i32
    %c0_i32_0 = arith.constant 0 : i32
    %c0_i32_1 = arith.constant 0 : i32
    return %arg0, %c0_i32, %c0_i32_0 : i32, i32, i32
  }
}

</mosaic_0001>

<llo_original>
// kernel: contrastive_crop_resize.1
$region0: #{contrastive_crop_resize.1}
  #allocation0 [shape = 'u32[]', space=smem, size = 0x4, offset = 0x4, fixed_abs, tag = 'smem constant byte address 0x4 - core index']
  #allocation1 [shape = 'u32[144,128]{1,0:T(1,128)}', space=vmem, size = 0x12000, scoped, tag = 'internal scratch']
  #allocation2 [shape = 's32[1]{0}', space=sflag, size = 0x4, scoped, tag = 'scoped memory for contrastive_crop_resize.1']
  #allocation3 [shape = 'u8[2048]{0}', space=smem, size = 0x800, scoped, tag = 'prefetched SMEM operand 0']
  %s0 = inlined_call_operand.vmem [shape: s32[4,2], index: 0, kind: input, shape index: {}]
  %s1 = inlined_call_operand.hbm [shape: f32[2,64,16], index: 1, kind: input, shape index: {}]
  %s2 = inlined_call_operand.hbm [shape: f32[2,32,8], index: 2, kind: output, shape index: {}]
  %s3 = sld [smem:[#allocation0]]
  $region41: #{contrastive_crop_resize.1} parent=0
    _
  %s5 = ssub.s32 1, %s3
  %s6 = scalar_select 0, %s5, %s3
  %s7 = sshll.u32 %s0, 4
  %s8 = int_to_ptr.vmem [resolvable:$true] %s7
  %10 = dma.vmem_to_smem %s8, 64, [#allocation3], [#allocation2]
  %11 = dma.done [#allocation2], 64
  %12 = sfence
  $region1: #{contrastive_crop_resize.1} parent=0
    #allocation4 [shape = 'u8[65536]{0}', space=vmem, size = 0x10000, scoped, tag = 'input window, operand 1']
    #allocation5 [shape = 's32[2]{0}', space=sflag, size = 0x8, scoped, tag = 'scoped memory for contrastive_crop_resize.1']
    #allocation6 [shape = 's32[2]{0}', space=sflag, size = 0x8, scoped, tag = 'scoped memory for contrastive_crop_resize.1']
    #allocation7 [shape = 'u8[32768]{0}', space=vmem, size = 0x8000, scoped, tag = 'output window, operand 0']
    %13 = vsyncpa [#allocation5], 0
    %s14 = scalar_lea.sflag [#allocation5], 1
    %15 = vsyncpa %s14, 0
    %16 = vsyncpa [#allocation6], 0
    %s17 = scalar_lea.sflag [#allocation6], 1
    %18 = vsyncpa %s17, 0
    loop: start=0, step=1, limit=4
    $region2: #{contrastive_crop_resize.1} parent=1 // loop_pre_header
      _
    $region3: #{contrastive_crop_resize.1} parent=1 // loop_header
      %s20 = sphi 0, %s24
      %p21 = scmp.ge.s32.totalorder %s20, 4
      %s30 = sphi 0, %s32
      %s33 = sphi 0, %s30
      %s34 = sphi 0, %s33
      %s50 = sphi 0, %s34
      %s56 = sphi 0, %s58
      %s59 = sphi 0, %s56
      %s60 = sphi 0, %s59
      %s76 = sphi 0, %s60
    $region4: #{contrastive_crop_resize.1} parent=1 // loop_header_branch
      %23 = sbr.rel (%p21) target = $region8
    $region5: #{contrastive_crop_resize.1} parent=1 // loop_body
      %s25 = ssub.s32 %s20, 1
      %s26 = ssub.s32 %s20, 2
      %s27 = sadd.s32 %s20, 1
      %s28 = ssub.s32 %s20, %s27
      %p29 = scmp.eq.s32.totalorder %s28, 0
      %s31 = sadd.s32 %s30, 1
      %s32 = scalar_select %p29, %s30, %s31
      %p35 = pneg %p29
      %p36 = scmp.eq.s32.totalorder %s20, 1
      %p37 = por %p35, %p36
      %p38 = scmp.ne.s32.totalorder %s30, %s33
      %p39 = scmp.eq.s32.totalorder %s20, 0
      %p40 = por %p38, %p39
      %p41 = scmp.ne.s32.totalorder %s30, %s33
      %p42 = scmp.eq.s32.totalorder %s25, 1
      %p43 = por %p41, %p42
      %p44 = scmp.ne.s32.totalorder %s33, %s34
      %p45 = scmp.eq.s32.totalorder %s25, 0
      %p46 = por %p44, %p45
      %p47 = scmp.ne.s32.totalorder %s33, %s34
      %p48 = scmp.eq.s32.totalorder %s26, 1
      %p49 = por %p47, %p48
      %p51 = scmp.ne.s32.totalorder %s34, %s50
      %p52 = scmp.eq.s32.totalorder %s26, 0
      %p53 = por %p51, %p52
      %s54 = ssub.s32 %s20, %s27
      %p55 = scmp.eq.s32.totalorder %s54, 0
      %s57 = sadd.s32 %s56, 1
      %s58 = scalar_select %p55, %s56, %s57
      %p61 = pneg %p55
      %p62 = scmp.eq.s32.totalorder %s20, 1
      %p63 = por %p61, %p62
      %p64 = scmp.ne.s32.totalorder %s56, %s59
      %p65 = scmp.eq.s32.totalorder %s20, 0
      %p66 = por %p64, %p65
      %p67 = scmp.ne.s32.totalorder %s56, %s59
      %p68 = scmp.eq.s32.totalorder %s25, 1
      %p69 = por %p67, %p68
      %p70 = scmp.ne.s32.totalorder %s59, %s60
      %p71 = scmp.eq.s32.totalorder %s25, 0
      %p72 = por %p70, %p71
      %p73 = scmp.ne.s32.totalorder %s59, %s60
      %p74 = scmp.eq.s32.totalorder %s26, 1
      %p75 = por %p73, %p74
      %p77 = scmp.ne.s32.totalorder %s60, %s76
      %p78 = scmp.eq.s32.totalorder %s26, 0
      %p79 = por %p77, %p78
      %p80 = scmp.le.s32.totalorder 1, %s20
      %p81 = scmp.lt.s32.totalorder %s20, 3
      %p82 = pnand %p80, %p81
      %p83 = pneg %p82
      // Predicated region
      $region9: #{contrastive_crop_resize.1} parent=5 // pred_check
        _
      $region10: #{contrastive_crop_resize.1} parent=5 // pred_check_branch
        %85 = sbr.rel (%p82) target = $region12
      $region11: #{contrastive_crop_resize.1} parent=5 // pred_region
        %s86 = ssub.s32 %s20, 1
      $region12: #{contrastive_crop_resize.1} parent=5 // pred_fallthru
        _
      %p87 = scmp.lt.s32.totalorder %s20, 2
      // Predicated region
      $region13: #{contrastive_crop_resize.1} parent=5 // pred_check
        %p88 = pneg %p87
      $region14: #{contrastive_crop_resize.1} parent=5 // pred_check_branch
        %90 = sbr.rel (%p88) target = $region16
      $region15: #{contrastive_crop_resize.1} parent=5 // pred_region
        // Predicated region
        $region17: #{contrastive_crop_resize.1} parent=15 // pred_check
          %p91 = pneg %p40
        $region18: #{contrastive_crop_resize.1} parent=15 // pred_check_branch
          %93 = sbr.rel (%p91) target = $region20
        $region19: #{contrastive_crop_resize.1} parent=15 // pred_region
          %s94 = sand.u32 %s30, 1
          %s95 = scalar_lea.sflag [#allocation5], %s94
          %s96 = sand.u32 %s30, 1
          %s97 = smul.addr %s96, 64
          %s98 = scalar_lea.vmem [#allocation4], %s97
          %s100 = ssub.s32 1024, 1024
          %101 = vsyncadd %s95, %s100
          %s102 = smul.addr %s20, 8
          %s103 = smul.addr %s102, 128
          %s104 = scalar_lea.hbm %s1, %s103
          %s105 = sshll.u32 %s98, 4
          %s106 = int_to_ptr.vmem [resolvable:$true] %s105
          %111 = dma.hbm_to_vmem [thread:$0]  %s104, 1024, %s106, %s95, 128, 128, 8
        $region20: #{contrastive_crop_resize.1} parent=15 // pred_fallthru
          _
      $region16: #{contrastive_crop_resize.1} parent=5 // pred_fallthru
        _
      %p112 = scmp.le.s32.totalorder 1, %s20
      %p113 = scmp.lt.s32.totalorder %s20, 3
      %p114 = pnand %p112, %p113
      %p115 = pneg %p114
      // Predicated region
      $region21: #{contrastive_crop_resize.1} parent=5 // pred_check
        _
      $region22: #{contrastive_crop_resize.1} parent=5 // pred_check_branch
        %117 = sbr.rel (%p114) target = $region24
      $region23: #{contrastive_crop_resize.1} parent=5 // pred_region
        %s118 = ssub.s32 %s20, 1
        %s119 = sand.u32 %s33, 1
        %s120 = scalar_lea.sflag [#allocation5], %s119
        %s121 = sand.u32 %s33, 1
        %s122 = smul.addr %s121, 64
        %s123 = scalar_lea.vmem [#allocation4], %s122
        // Predicated region
        $region25: #{contrastive_crop_resize.1} parent=23 // pred_check
          %p124 = pneg %p46
        $region26: #{contrastive_crop_resize.1} parent=23 // pred_check_branch
          %126 = sbr.rel (%p124) target = $region28
        $region27: #{contrastive_crop_resize.1} parent=23 // pred_region
          %127 = dma.done %s120, 1024
        $region28: #{contrastive_crop_resize.1} parent=23 // pred_fallthru
          _
        %s128 = sand.u32 %s33, 1
        %s129 = scalar_lea.sflag [#allocation5], %s128
        %s130 = sand.u32 %s33, 1
        %s131 = smul.addr %s130, 64
        %s132 = scalar_lea.vmem [#allocation4], %s131
        %p133 = pneg %p46
        %p134 = pneg %p43
        %p135 = pneg %p72
        %p136 = pneg %p69
        %s137 = sand.u32 %s59, 1
        %s138 = scalar_lea.sflag [#allocation6], %s137
        %s139 = sand.u32 %s59, 1
        %s140 = smul.addr %s139, 32
        %s141 = scalar_lea.vmem [#allocation7], %s140
        %s143 = sld [smem:[#allocation3 + %s25]]
        %s144 = sshra.s32 %s25, 7
        %s145 = sand.u32 %s25, 127
        %s146 = sadd.s32 %s144, 1
        %s147 = smul.u32 %s146, 128
        %s148 = sshra.s32 %s25, 7
        %s149 = sand.u32 %s25, 127
        %s150 = sadd.s32 %s147, %s149
        %s151 = sld [smem:[#allocation3 + %s150]]
        %s152 = sadd.s32 %s144, 2
        %s153 = smul.u32 %s152, 128
        %s154 = sadd.s32 %s153, %s149
        %s155 = sld [smem:[#allocation3 + %s154]]
        %s156 = sadd.s32 %s144, 3
        %s157 = smul.u32 %s156, 128
        %s158 = sadd.s32 %s157, %s149
        %s159 = sld [smem:[#allocation3 + %s158]]
        %v160 = vlaneseq
        %v161 = vshrl.u32 %v160, 7
        %v162 = vcvt.s32.f32 %v161
        %v163 = vlaneseq
        %v164 = vand.u32 %v163, 127
        %s165 = scvt.s32.f32 %s155
        %v166 = vadd.f32 %v162, 0.5
        %v167 = vrcp.pop 8.0
        %s168 = vtos %v167
        %s169 = smul.f32 %s165, %s168
        %v170 = vstv %s169
        %v171 = vmul.f32 %v166, %v170
        %v172 = vsub.f32 %v171, 0.5
        %s173 = ssub.f32 %s165, 1.0
        %v174 = vmax.f32 %v172, 0.0
        %v175 = vstv %s173
        %v176 = vmin.f32 %v175, %v174
        %v177 = vfloor.f32 %v176
        %v178 = vsub.f32 %v176, %v177
        %v179 = vcvt.f32.s32.to.zero.pseudo %v177
        %v180 = vadd.s32 %v179, 1
        %s181 = ssub.s32 %s155, 1
        %v182 = vstv %s181
        %vm183 = vcmp.lt.s32.totalorder %v180, %v182
        %v184 = vsel %vm183, %v180, %v182
        %v185 = vstv %s143
        %v186 = vadd.s32 %v185, %v179
        %vm187 = vcmp.eq.s32.totalorder %v164, %v186
        %v188 = vsub.f32 1.0, %v178
        %v189 = vsel %vm187, %v188, 0.0
        %v190 = vadd.s32 %v185, %v184
        %vm191 = vcmp.eq.s32.totalorder %v164, %v190
        %v192 = vsel %vm191, %v178, 0.0
        %v193 = vadd.f32 %v189, %v192
        %v194 = vcvt.s32.f32 %v164
        %v195 = vadd.s32 %v161, 8
        %s196 = scvt.s32.f32 %s159
        %v197 = vadd.f32 %v194, 0.5
        %v198 = vrcp.pop 8.0
        %s199 = vtos %v198
        %s200 = smul.f32 %s196, %s199
        %v201 = vstv %s200
        %v202 = vmul.f32 %v197, %v201
        %v203 = vsub.f32 %v202, 0.5
        %s204 = ssub.f32 %s196, 1.0
        %v205 = vmax.f32 %v203, 0.0
        %v206 = vstv %s204
        %v207 = vmin.f32 %v206, %v205
        %v208 = vfloor.f32 %v207
        %v209 = vsub.f32 %v207, %v208
        %v210 = vcvt.f32.s32.to.zero.pseudo %v208
        %v211 = vadd.s32 %v210, 1
        %s212 = ssub.s32 %s159, 1
        %v213 = vstv %s212
        %vm214 = vcmp.lt.s32.totalorder %v211, %v213
        %v215 = vsel %vm214, %v211, %v213
        %v216 = vstv %s151
        %v217 = vadd.s32 %v216, %v210
        %vm218 = vcmp.eq.s32.totalorder %v161, %v217
        %vm219 = vcmp.eq.s32.totalorder %v195, %v217
        %v220 = vsub.f32 1.0, %v209
        %v221 = vsel %vm218, %v220, 0.0
        %v222 = vsel %vm219, %v220, 0.0
        %v223 = vadd.s32 %v216, %v215
        %vm224 = vcmp.eq.s32.totalorder %v161, %v223
        %vm225 = vcmp.eq.s32.totalorder %v195, %v223
        %v226 = vsel %vm224, %v209, 0.0
        %v227 = vsel %vm225, %v209, 0.0
        %v228 = vadd.f32 %v221, %v226
        %v229 = vadd.f32 %v222, %v227
        %v230 = vpack.c.bf16 %v193, %v193
        %v231 = vpack.c.bf16 %v229, %v228
        %v232 = vld [vmem:[%s123] sm:$0xff]
        %v233 = vld [vmem:[%s123 + $0x8] sm:$0xff]
        %v234 = vld [vmem:[%s123 + $0x10] sm:$0xff]
        %v235 = vld [vmem:[%s123 + $0x18] sm:$0xff]
        %v236 = vld [vmem:[%s123 + $0x20] sm:$0xff]
        %v237 = vld [vmem:[%s123 + $0x28] sm:$0xff]
        %v238 = vld [vmem:[%s123 + $0x30] sm:$0xff]
        %v239 = vld [vmem:[%s123 + $0x38] sm:$0xff]
        %v240 = vpack.c.bf16 %v233, %v232
        %v241 = vpack.c.bf16 %v235, %v234
        %v242 = vpack.c.bf16 %v237, %v236
        %v243 = vpack.c.bf16 %v239, %v238
        %vm244 = vcmask 130048
        %v246 = vsel %vm244, %v240, 0
        %v249 = vsel %vm244, %v241, 0
        %v252 = vsel %vm244, %v242, 0
        %v255 = vsel %vm244, %v243, 0
        %257 = vmatprep.subr.bf16.mxu0 0
        %258 = vmatpush1.bf16.msra.mxu0 %v231
        %259 = vmatprep.subr.bf16.mxu0 0
        %260 = vmatpush1.bf16.msra.mxu0 0
        %261 = vmatprep.subr.bf16.mxu0 0
        %262 = vmatpush1.bf16.msra.mxu0 0
        %263 = vmatprep.subr.bf16.mxu0 0
        %264 = vmatpush1.bf16.msra.mxu0 0
        %265 = vmatprep.subr.bf16.mxu0 0
        %266 = vmatpush1.bf16.msra.mxu0 0
        %267 = vmatprep.subr.bf16.mxu0 0
        %268 = vmatpush1.bf16.msra.mxu0 0
        %269 = vmatprep.subr.bf16.mxu0 0
        %270 = vmatpush1.bf16.msra.mxu0 0
        %271 = vmatprep.subr.bf16.mxu0 0
        %272 = vmatpush1.bf16.msra.mxu0 0
        %273 = vmatprep.subr.bf16.mxu0 0
        %274 = vmatpush1.bf16.msra.mxu0 0
        %275 = vmatprep.subr.bf16.mxu0 0
        %276 = vmatpush1.bf16.msra.mxu0 0
        %277 = vmatprep.subr.bf16.mxu0 0
        %278 = vmatpush1.bf16.msra.mxu0 0
        %279 = vmatprep.subr.bf16.mxu0 0
        %280 = vmatpush1.bf16.msra.mxu0 0
        %281 = vmatprep.subr.bf16.mxu0 0
        %282 = vmatpush1.bf16.msra.mxu0 0
        %283 = vmatprep.subr.bf16.mxu0 0
        %284 = vmatpush1.bf16.msra.mxu0 0
        %285 = vmatprep.subr.bf16.mxu0 0
        %286 = vmatpush1.bf16.msra.mxu0 0
        %287 = vmatprep.subr.bf16.mxu0 0
        %288 = vmatpush1.bf16.msra.mxu0 0
        %289 = vmatprep.mubr.bf16.mxu0 0
        %290 = vmatmul.mubr.bf16.gmra.mrb[0].mxu0 %v246
        %v291 = vpop.f32.mrb[0].mxu0
        %v292 = vadd.f32 0.0, %v291
        %v293 = vpop.f32.mrb[0].mxu0
        %v294 = vpop.f32.mrb[0].mxu0
        %v295 = vadd.f32 0.0, %v294
        %v296 = vpop.f32.mrb[0].mxu0
        %297 = vmatprep.mubr.bf16.mxu0 0
        %298 = vmatmul.mubr.bf16.gmra.mrb[0].mxu0 %v249
        %v299 = vpop.f32.mrb[0].mxu0
        %v300 = vadd.f32 0.0, %v299
        %v301 = vpop.f32.mrb[0].mxu0
        %v302 = vpop.f32.mrb[0].mxu0
        %v303 = vadd.f32 0.0, %v302
        %v304 = vpop.f32.mrb[0].mxu0
        %305 = vmatprep.mubr.bf16.mxu0 0
        %306 = vmatmul.mubr.bf16.gmra.mrb[0].mxu0 %v252
        %v307 = vpop.f32.mrb[0].mxu0
        %v308 = vadd.f32 0.0, %v307
        %v309 = vpop.f32.mrb[0].mxu0
        %v310 = vpop.f32.mrb[0].mxu0
        %v311 = vadd.f32 0.0, %v310
        %v312 = vpop.f32.mrb[0].mxu0
        %313 = vmatprep.mubr.bf16.mxu0 0
        %314 = vmatmul.mubr.bf16.gmra.mrb[0].mxu0 %v255
        %v315 = vpop.f32.mrb[0].mxu0
        %v316 = vadd.f32 0.0, %v315
        %v317 = vpop.f32.mrb[0].mxu0
        %v318 = vpop.f32.mrb[0].mxu0
        %v319 = vadd.f32 0.0, %v318
        %v320 = vpop.f32.mrb[0].mxu0
        %321 = vdwg.mxu0
        %v322 = vpack.c.bf16 %v295, %v292
        %v323 = vpack.c.bf16 %v303, %v300
        %v324 = vpack.c.bf16 %v311, %v308
        %v325 = vpack.c.bf16 %v319, %v316
        %v327 = vsel %vm244, %v230, 0
        %329 = vmatprep.subr.bf16.mxu0 0
        %330 = vmatpush1.bf16.msra.mxu0 %v322
        %331 = vmatprep.subr.bf16.mxu0 0
        %332 = vmatpush1.bf16.msra.mxu0 0
        %333 = vmatprep.subr.bf16.mxu0 0
        %334 = vmatpush1.bf16.msra.mxu0 0
        %335 = vmatprep.subr.bf16.mxu0 0
        %336 = vmatpush1.bf16.msra.mxu0 0
        %337 = vmatprep.subr.bf16.mxu0 0
        %338 = vmatpush1.bf16.msra.mxu0 0
        %339 = vmatprep.subr.bf16.mxu0 0
        %340 = vmatpush1.bf16.msra.mxu0 0
        %341 = vmatprep.subr.bf16.mxu0 0
        %342 = vmatpush1.bf16.msra.mxu0 0
        %343 = vmatprep.subr.bf16.mxu0 0
        %344 = vmatpush1.bf16.msra.mxu0 0
        %345 = vmatprep.subr.bf16.mxu0 0
        %346 = vmatpush1.bf16.msra.mxu0 0
        %347 = vmatprep.subr.bf16.mxu0 0
        %348 = vmatpush1.bf16.msra.mxu0 0
        %349 = vmatprep.subr.bf16.mxu0 0
        %350 = vmatpush1.bf16.msra.mxu0 0
        %351 = vmatprep.subr.bf16.mxu0 0
        %352 = vmatpush1.bf16.msra.mxu0 0
        %353 = vmatprep.subr.bf16.mxu0 0
        %354 = vmatpush1.bf16.msra.mxu0 0
        %355 = vmatprep.subr.bf16.mxu0 0
        %356 = vmatpush1.bf16.msra.mxu0 0
        %357 = vmatprep.subr.bf16.mxu0 0
        %358 = vmatpush1.bf16.msra.mxu0 0
        %359 = vmatprep.subr.bf16.mxu0 0
        %360 = vmatpush1.bf16.msra.mxu0 0
        %361 = vmatprep.mubr.bf16.mxu0 0
        %362 = vmatmul.mubr.bf16.gmra.mrb[0].mxu0 %v327
        %v363 = vpop.f32.mrb[0].mxu0
        %v364 = vadd.f32 0.0, %v363
        %v365 = vpop.f32.mrb[0].mxu0
        %v366 = vpop.f32.mrb[0].mxu0
        %v367 = vpop.f32.mrb[0].mxu0
        %368 = vdwg.mxu0
        %vm369 = vcmask 64512
        %370 = vst.msk [vmem:[%s141] sm:$0xff] %vm369, %v364
        %371 = vmatprep.subr.bf16.mxu0 0
        %372 = vmatpush1.bf16.msra.mxu0 %v323
        %373 = vmatprep.subr.bf16.mxu0 0
        %374 = vmatpush1.bf16.msra.mxu0 0
        %375 = vmatprep.subr.bf16.mxu0 0
        %376 = vmatpush1.bf16.msra.mxu0 0
        %377 = vmatprep.subr.bf16.mxu0 0
        %378 = vmatpush1.bf16.msra.mxu0 0
        %379 = vmatprep.subr.bf16.mxu0 0
        %380 = vmatpush1.bf16.msra.mxu0 0
        %381 = vmatprep.subr.bf16.mxu0 0
        %382 = vmatpush1.bf16.msra.mxu0 0
        %383 = vmatprep.subr.bf16.mxu0 0
        %384 = vmatpush1.bf16.msra.mxu0 0
        %385 = vmatprep.subr.bf16.mxu0 0
        %386 = vmatpush1.bf16.msra.mxu0 0
        %387 = vmatprep.subr.bf16.mxu0 0
        %388 = vmatpush1.bf16.msra.mxu0 0
        %389 = vmatprep.subr.bf16.mxu0 0
        %390 = vmatpush1.bf16.msra.mxu0 0
        %391 = vmatprep.subr.bf16.mxu0 0
        %392 = vmatpush1.bf16.msra.mxu0 0
        %393 = vmatprep.subr.bf16.mxu0 0
        %394 = vmatpush1.bf16.msra.mxu0 0
        %395 = vmatprep.subr.bf16.mxu0 0
        %396 = vmatpush1.bf16.msra.mxu0 0
        %397 = vmatprep.subr.bf16.mxu0 0
        %398 = vmatpush1.bf16.msra.mxu0 0
        %399 = vmatprep.subr.bf16.mxu0 0
        %400 = vmatpush1.bf16.msra.mxu0 0
        %401 = vmatprep.subr.bf16.mxu0 0
        %402 = vmatpush1.bf16.msra.mxu0 0
        %403 = vmatprep.mubr.bf16.mxu0 0
        %404 = vmatmul.mubr.bf16.gmra.mrb[0].mxu0 %v327
        %v405 = vpop.f32.mrb[0].mxu0
        %v406 = vadd.f32 0.0, %v405
        %v407 = vpop.f32.mrb[0].mxu0
        %v408 = vpop.f32.mrb[0].mxu0
        %v409 = vpop.f32.mrb[0].mxu0
        %410 = vdwg.mxu0
        %411 = vst.msk [vmem:[%s141 + $0x8] sm:$0xff] %vm369, %v406
        %412 = vmatprep.subr.bf16.mxu0 0
        %413 = vmatpush1.bf16.msra.mxu0 %v324
        %414 = vmatprep.subr.bf16.mxu0 0
        %415 = vmatpush1.bf16.msra.mxu0 0
        %416 = vmatprep.subr.bf16.mxu0 0
        %417 = vmatpush1.bf16.msra.mxu0 0
        %418 = vmatprep.subr.bf16.mxu0 0
        %419 = vmatpush1.bf16.msra.mxu0 0
        %420 = vmatprep.subr.bf16.mxu0 0
        %421 = vmatpush1.bf16.msra.mxu0 0
        %422 = vmatprep.subr.bf16.mxu0 0
        %423 = vmatpush1.bf16.msra.mxu0 0
        %424 = vmatprep.subr.bf16.mxu0 0
        %425 = vmatpush1.bf16.msra.mxu0 0
        %426 = vmatprep.subr.bf16.mxu0 0
        %427 = vmatpush1.bf16.msra.mxu0 0
        %428 = vmatprep.subr.bf16.mxu0 0
        %429 = vmatpush1.bf16.msra.mxu0 0
        %430 = vmatprep.subr.bf16.mxu0 0
        %431 = vmatpush1.bf16.msra.mxu0 0
        %432 = vmatprep.subr.bf16.mxu0 0
        %433 = vmatpush1.bf16.msra.mxu0 0
        %434 = vmatprep.subr.bf16.mxu0 0
        %435 = vmatpush1.bf16.msra.mxu0 0
        %436 = vmatprep.subr.bf16.mxu0 0
        %437 = vmatpush1.bf16.msra.mxu0 0
        %438 = vmatprep.subr.bf16.mxu0 0
        %439 = vmatpush1.bf16.msra.mxu0 0
        %440 = vmatprep.subr.bf16.mxu0 0
        %441 = vmatpush1.bf16.msra.mxu0 0
        %442 = vmatprep.subr.bf16.mxu0 0
        %443 = vmatpush1.bf16.msra.mxu0 0
        %444 = vmatprep.mubr.bf16.mxu0 0
        %445 = vmatmul.mubr.bf16.gmra.mrb[0].mxu0 %v327
        %v446 = vpop.f32.mrb[0].mxu0
        %v447 = vadd.f32 0.0, %v446
        %v448 = vpop.f32.mrb[0].mxu0
        %v449 = vpop.f32.mrb[0].mxu0
        %v450 = vpop.f32.mrb[0].mxu0
        %451 = vdwg.mxu0
        %452 = vst.msk [vmem:[%s141 + $0x10] sm:$0xff] %vm369, %v447
        %453 = vmatprep.subr.bf16.mxu0 0
        %454 = vmatpush1.bf16.msra.mxu0 %v325
        %455 = vmatprep.subr.bf16.mxu0 0
        %456 = vmatpush1.bf16.msra.mxu0 0
        %457 = vmatprep.subr.bf16.mxu0 0
        %458 = vmatpush1.bf16.msra.mxu0 0
        %459 = vmatprep.subr.bf16.mxu0 0
        %460 = vmatpush1.bf16.msra.mxu0 0
        %461 = vmatprep.subr.bf16.mxu0 0
        %462 = vmatpush1.bf16.msra.mxu0 0
        %463 = vmatprep.subr.bf16.mxu0 0
        %464 = vmatpush1.bf16.msra.mxu0 0
        %465 = vmatprep.subr.bf16.mxu0 0
        %466 = vmatpush1.bf16.msra.mxu0 0
        %467 = vmatprep.subr.bf16.mxu0 0
        %468 = vmatpush1.bf16.msra.mxu0 0
        %469 = vmatprep.subr.bf16.mxu0 0
        %470 = vmatpush1.bf16.msra.mxu0 0
        %471 = vmatprep.subr.bf16.mxu0 0
        %472 = vmatpush1.bf16.msra.mxu0 0
        %473 = vmatprep.subr.bf16.mxu0 0
        %474 = vmatpush1.bf16.msra.mxu0 0
        %475 = vmatprep.subr.bf16.mxu0 0
        %476 = vmatpush1.bf16.msra.mxu0 0
        %477 = vmatprep.subr.bf16.mxu0 0
        %478 = vmatpush1.bf16.msra.mxu0 0
        %479 = vmatprep.subr.bf16.mxu0 0
        %480 = vmatpush1.bf16.msra.mxu0 0
        %481 = vmatprep.subr.bf16.mxu0 0
        %482 = vmatpush1.bf16.msra.mxu0 0
        %483 = vmatprep.subr.bf16.mxu0 0
        %484 = vmatpush1.bf16.msra.mxu0 0
        %485 = vmatprep.mubr.bf16.mxu0 0
        %486 = vmatmul.mubr.bf16.gmra.mrb[0].mxu0 %v327
        %v487 = vpop.f32.mrb[0].mxu0
        %v488 = vadd.f32 0.0, %v487
        %v489 = vpop.f32.mrb[0].mxu0
        %v490 = vpop.f32.mrb[0].mxu0
        %v491 = vpop.f32.mrb[0].mxu0
        %492 = vdwg.mxu0
        %493 = vst.msk [vmem:[%s141 + $0x18] sm:$0xff] %vm369, %v488
        %s494 = sand.u32 %s59, 1
        %s495 = scalar_lea.sflag [#allocation6], %s494
        %s496 = sand.u32 %s59, 1
        %s497 = smul.addr %s496, 32
        %s498 = scalar_lea.vmem [#allocation7], %s497
        // Predicated region
        $region29: #{contrastive_crop_resize.1} parent=23 // pred_check
          %p499 = pneg %p69
        $region30: #{contrastive_crop_resize.1} parent=23 // pred_check_branch
          %501 = sbr.rel (%p499) target = $region32
        $region31: #{contrastive_crop_resize.1} parent=23 // pred_region
          %s503 = ssub.s32 512, 512
          %504 = vsyncadd %s495, %s503
          %s505 = smul.addr %s25, 4
          %s506 = smul.addr %s505, 128
          %s507 = scalar_lea.hbm %s2, %s506
          %s508 = sshll.u32 %s498, 4
          %s509 = int_to_ptr.vmem [resolvable:$true] %s508
          %514 = dma.vmem_to_hbm [thread:$0]  %s509, 512, %s507, %s495, 128, 128, 8
        $region32: #{contrastive_crop_resize.1} parent=23 // pred_fallthru
          _
      $region24: #{contrastive_crop_resize.1} parent=5 // pred_fallthru
        _
      %p515 = scmp.le.s32.totalorder 2, %s20
      // Predicated region
      $region33: #{contrastive_crop_resize.1} parent=5 // pred_check
        %p516 = pneg %p515
      $region34: #{contrastive_crop_resize.1} parent=5 // pred_check_branch
        %518 = sbr.rel (%p516) target = $region36
      $region35: #{contrastive_crop_resize.1} parent=5 // pred_region
        %s519 = ssub.s32 %s20, 2
        // Predicated region
        $region37: #{contrastive_crop_resize.1} parent=35 // pred_check
          %p520 = pneg %p75
        $region38: #{contrastive_crop_resize.1} parent=35 // pred_check_branch
          %522 = sbr.rel (%p520) target = $region40
        $region39: #{contrastive_crop_resize.1} parent=35 // pred_region
          %s523 = sand.u32 %s60, 1
          %s524 = scalar_lea.sflag [#allocation6], %s523
          %s525 = sand.u32 %s60, 1
          %s526 = smul.addr %s525, 32
          %s527 = scalar_lea.vmem [#allocation7], %s526
          %528 = dma.done %s524, 512
        $region40: #{contrastive_crop_resize.1} parent=35 // pred_fallthru
          _
      $region36: #{contrastive_crop_resize.1} parent=5 // pred_fallthru
        _
    $region6: #{contrastive_crop_resize.1} parent=1 // loop_footer
      %s24 = sadd.s32 1, %s20
    $region7: #{contrastive_crop_resize.1} parent=1 // loop_footer_branch
      %19 = sbr.rel target = $region3
    $region8: #{contrastive_crop_resize.1} parent=1 // loop_exit
      _
    %529 = vsyncpa [#allocation5], 1
    %s530 = scalar_lea.sflag [#allocation5], 1
    %531 = vsyncpa %s530, 1
    %532 = vsyncpa [#allocation6], 1
    %s533 = scalar_lea.sflag [#allocation6], 1
    %534 = vsyncpa %s533, 1

</llo_original>
